<compile_context>
chip_gen: v5e
topology: v5e:2x2
jax: 0.10.0
libtpu: 0.0.40
codegen_flags: <defaults>
</compile_context>

<pallas_src>
import functools

import jax
import jax.numpy as jnp
import numpy as np
from jax.experimental import pallas as pl
from jax.experimental.pallas import tpu as pltpu


_LANE = 128
_SUBLANE = 8
_PACK_TARGET = 1024                      # max packed super-row width (lanes)
_DEFAULT_VMEM = 64 * 1024 * 1024         # assume v7x if the chip can't be queried


def _round_up(x, m):
    return (x + m - 1) // m * m


def _vmem_budget():
    """(vmem_limit_bytes, byte budget for pipelined blocks), generation-aware."""
    try:
        phys = int(pltpu.get_tpu_info().vmem_capacity_bytes)
    except Exception:
        phys = _DEFAULT_VMEM
    vmem_limit = min(phys * 3 // 4, 96 * 1024 * 1024)   # 48 MiB v7x, 96 MiB v5e/v6e
    block_budget = vmem_limit * 7 // 10                 # headroom for compiler scratch
    return vmem_limit, block_budget


# ----------------------------------------------------------------------------
# MXU path: pooling as a single matmul against a constant pooling matrix.
# ----------------------------------------------------------------------------

def _build_pool_matrix(k, r, Wc, fold_scale):
    """P of shape (r*Wc, (r//k)*(Wc//k)) with x_superrow @ P == pooled superrow."""
    Wo = Wc // k
    Kc, Nc = r * Wc, (r // k) * Wo
    a = np.arange(Kc)
    b = np.arange(Nc)
    hit = (((a[:, None] // Wc) // k) == (b[None, :] // Wo)) & (
        ((a[:, None] % Wc) // k) == (b[None, :] % Wo))
    p = hit.astype(np.float32)
    if fold_scale:                       # 1/k^2 exact in bf16 when k is a power of 2
        p = p / float(k * k)
    return jnp.asarray(p, dtype=jnp.bfloat16)


def _choose_row_pack(Ho, Wc, k):
    """r = k*m rows per packed super-row; m | Ho so windows stay in one super-row."""
    best = 1
    for m in range(1, Ho + 1):
        if Ho % m == 0 and m * k * Wc <= _PACK_TARGET:
            best = m
    return best * k


def _pool_matmul_kernel(x_ref, p_ref, o_ref, *, n_split, scale):
    x = x_ref[...]
    p = p_ref[...]
    if n_split == 1:
        # bf16 input: one native MXU pass.
        acc = jnp.dot(x, p, preferred_element_type=jnp.float32)
    else:
        # f32 input: split into bf16 hi/lo (P is exact in bf16, so two native
        # bf16 matmuls reproduce the f32 result to ~2^-17 relative).
        x_hi = x.astype(jnp.bfloat16)
        x_lo = (x - x_hi.astype(jnp.float32)).astype(jnp.bfloat16)
        acc = jnp.dot(x_hi, p, preferred_element_type=jnp.float32)
        acc = acc + jnp.dot(x_lo, p, preferred_element_type=jnp.float32)
    if scale is not None:                # only when 1/k^2 is not exact in bf16
        acc = acc * scale
    o_ref[...] = acc.astype(o_ref.dtype)


def _pool_matmul(x2, p, scale, n_split):
    M, Kc = x2.shape
    Nc = p.shape[1]
    dtype = x2.dtype
    itemsize = jnp.dtype(dtype).itemsize

    vmem_limit, block_budget = _vmem_budget()
    # Padded per-row VMEM cost: double-buffered input + output blocks, plus the
    # f32 accumulator and (f32 path only) the bf16 hi/lo temporaries.
    Kp = _round_up(Kc, _LANE)
    Np = _round_up(Nc, _LANE)
    in_row = Kp * itemsize
    out_row = Np * itemsize
    acc_row = Np * 4
    split_row = 2 * Kp * 2 if n_split == 2 else 0
    p_pad = _round_up(Kc, 2 * _SUBLANE) * Np * jnp.dtype(p.dtype).itemsize

    per_row = 2 * (in_row + out_row) + acc_row + split_row
    tile_m = (block_budget - 2 * p_pad) // per_row
    tile_m = max(_SUBLANE, (tile_m // _SUBLANE) * _SUBLANE)
    if tile_m >= M:
        tile_m = M
        if M >= 2 * _SUBLANE:
            # Keep >= 2 grid steps so v7x's second TensorCore gets work;
            # costs one extra ~0.35us step on single-TC chips.
            tile_m = _round_up(pl.cdiv(M, 2), _SUBLANE)
    grid = (pl.cdiv(M, tile_m),)

    kernel = functools.partial(_pool_matmul_kernel, n_split=n_split, scale=scale)
    return pl.pallas_call(
        kernel,
        out_shape=jax.ShapeDtypeStruct((M, Nc), dtype),
        grid_spec=pltpu.PrefetchScalarGridSpec(
            num_scalar_prefetch=0,
            grid=grid,
            in_specs=[
                pl.BlockSpec((tile_m, Kc), lambda i: (i, 0)),
                pl.BlockSpec((Kc, Nc), lambda i: (0, 0)),   # resident constant P
            ],
            out_specs=pl.BlockSpec((tile_m, Nc), lambda i: (i, 0)),
        ),
        compiler_params=pltpu.CompilerParams(
            dimension_semantics=("parallel",),
            vmem_limit_bytes=int(vmem_limit),
        ),
    )(x2, p)


# ----------------------------------------------------------------------------
# Fallback for very wide planes (Wo already >= 128, output naturally lane-dense).
# ----------------------------------------------------------------------------

def _pool_strided_kernel(x_ref, o_ref, *, k):
    th_o = o_ref.shape[1]
    # Row pooling via strided sublane loads: the selection happens in the load
    # slot; upcast per slice (not per whole chunk) to keep vreg pressure low.
    acc = x_ref[:, pl.ds(0, th_o, stride=k), :].astype(jnp.float32)
    for i in range(1, k):
        acc = acc + x_ref[:, pl.ds(i, th_o, stride=k), :].astype(jnp.float32)
    # Column pooling: lane-strided adds (cheap relative to the HBM roofline here).
    out = acc[:, :, 0::k]
    for j in range(1, k):
        out = out + acc[:, :, j::k]
    o_ref[...] = (out * (1.0 / float(k * k))).astype(o_ref.dtype)


def _pool_strided(x3, k):
    NC, Hc, Wc = x3.shape
    Ho, Wo = Hc // k, Wc // k
    dtype = x3.dtype
    itemsize = jnp.dtype(dtype).itemsize

    vmem_limit, block_budget = _vmem_budget()
    in_row = _round_up(Wc, _LANE) * itemsize
    out_row = _round_up(Wo, _LANE) * itemsize
    f32_row = _round_up(Wc, _LANE) * 4
    h_unit = k * _SUBLANE                     # keeps in/out sublane blocks 8-aligned
    unit_bytes = 2 * (h_unit * in_row + _SUBLANE * out_row) + _SUBLANE * f32_row
    max_units = max(1, block_budget // unit_bytes)

    units_per_plane = pl.cdiv(Hc, h_unit)
    if units_per_plane <= max_units:
        tile_h = Hc
        tile_nc = min(NC, max(1, max_units // units_per_plane))
    else:
        tile_nc = 1
        tile_h = min(max_units, units_per_plane - 1) * h_unit
    if tile_nc >= NC and pl.cdiv(Hc, tile_h) == 1 and NC >= 2:
        tile_nc = pl.cdiv(NC, 2)             # >= 2 grid steps for v7x dual-TC

    grid = (pl.cdiv(NC, tile_nc), pl.cdiv(Hc, tile_h))
    kernel = functools.partial(_pool_strided_kernel, k=k)
    return pl.pallas_call(
        kernel,
        out_shape=jax.ShapeDtypeStruct((NC, Ho, Wo), dtype),
        grid_spec=pltpu.PrefetchScalarGridSpec(
            num_scalar_prefetch=0,
            grid=grid,
            in_specs=[pl.BlockSpec((tile_nc, tile_h, Wc), lambda i, h: (i, h, 0))],
            out_specs=pl.BlockSpec((tile_nc, tile_h // k, Wo),
                                   lambda i, h: (i, h, 0)),
        ),
        compiler_params=pltpu.CompilerParams(
            dimension_semantics=("parallel", "parallel"),
            vmem_limit_bytes=int(vmem_limit),
        ),
    )(x3)


# ----------------------------------------------------------------------------
# Public wrapper (matches nn.AvgPool2d(kernel_size, stride) forward semantics).
# ----------------------------------------------------------------------------

def avg_pooling_2d(x, kernel_size=2, stride=2):
    assert stride == kernel_size, "this kernel implements the non-overlapping case"
    k = int(kernel_size)
    N, C, H, W = x.shape
    Ho, Wo = H // k, W // k
    assert Ho >= 1 and Wo >= 1, "input spatial dims smaller than the pooling window"
    Hc, Wc = Ho * k, Wo * k

    orig_dtype = x.dtype
    compute_dtype = jnp.bfloat16 if x.dtype == jnp.bfloat16 else jnp.float32
    if x.dtype != compute_dtype:
        x = x.astype(compute_dtype)
    # AvgPool2d drops trailing rows/cols that don't fill a full window.
    if (Hc, Wc) != (H, W):
        x = x[:, :, :Hc, :Wc]
    NC = N * C

    r = _choose_row_pack(Ho, Wc, k)
    if r * Wc <= _PACK_TARGET:
        fold = (k & (k - 1)) == 0            # 1/k^2 exact in bf16 for power-of-2 k
        p = _build_pool_matrix(k, r, Wc, fold_scale=fold)
        scale = None if fold else 1.0 / float(k * k)
        n_split = 1 if compute_dtype == jnp.bfloat16 else 2
        S = Hc // r
        out = _pool_matmul(x.reshape(NC * S, r * Wc), p, scale, n_split)
    else:
        out = _pool_strided(x.reshape(NC, Hc, Wc), k)

    out = out.reshape(N, C, Ho, Wo)
    if out.dtype != orig_dtype:
        out = out.astype(orig_dtype)
    return out


def _reference_avgpool(x, k=2):
    N, C, H, W = x.shape
    Ho, Wo = H // k, W // k
    xr = x[:, :, : Ho * k, : Wo * k].reshape(N, C, Ho, k, Wo, k)
    return xr.mean(axis=(3, 5))


if __name__ == "__main__":
    key = jax.random.PRNGKey(0)
    x = jax.random.normal(key, (2, 4, 16, 16), dtype=jnp.float32)

    out = avg_pooling_2d(x, kernel_size=2, stride=2)
    out = jax.block_until_ready(out)

    ref = _reference_avgpool(x, k=2)
    assert out.shape == (2, 4, 8, 8), out.shape
    assert out.dtype == x.dtype, out.dtype
    # f32 inputs are pooled via a bf16 hi/lo split (P exact in bf16), accurate
    # to ~1.5e-5 relative versus the exact f32 mean.
    err = float(jnp.max(jnp.abs(out - ref)))
    assert jnp.allclose(out, ref, atol=1e-3, rtol=1e-3), err

    print("KERNEL_OK")
</pallas_src>

<mosaic_0001>
module attributes {stable_mosaic.version = 11 : i64} {
  func.func @_pool_matmul_kernel(%arg0: i32, %arg1: memref<8x256xf32, #tpu.memory_space<vmem>>, %arg2: memref<256x64xbf16, #tpu.memory_space<vmem>>, %arg3: memref<8x64xf32, #tpu.memory_space<vmem>>) attributes {dimension_semantics = [#tpu.dimension_semantics<parallel>], iteration_bounds = array<i64: 1>, scalar_prefetch = 0 : i64, scratch_operands = 0 : i64, tpu.core_type = #tpu.core_type<tc>, window_params = [{transform_indices = @transform_0, window_bounds = array<i64: 8, 256>}, {pipeline_mode = #tpu.pipeline_mode<synchronous>, transform_indices = @transform_1, window_bounds = array<i64: 256, 64>}, {transform_indices = @transform_2, window_bounds = array<i64: 8, 64>}]} {
    %c0 = arith.constant 0 : index
    %c0_0 = arith.constant 0 : index
    %0 = vector.load %arg1[%c0, %c0_0] : memref<8x256xf32, #tpu.memory_space<vmem>>, vector<8x256xf32>
    %c0_1 = arith.constant 0 : index
    %c0_2 = arith.constant 0 : index
    %1 = vector.load %arg2[%c0_1, %c0_2] : memref<256x64xbf16, #tpu.memory_space<vmem>>, vector<256x64xbf16>
    %2 = arith.truncf %0 : vector<8x256xf32> to vector<8x256xbf16>
    %3 = arith.extf %2 : vector<8x256xbf16> to vector<8x256xf32>
    %4 = arith.subf %0, %3 : vector<8x256xf32>
    %5 = arith.truncf %4 : vector<8x256xf32> to vector<8x256xbf16>
    %cst = arith.constant dense<0.000000e+00> : vector<8x64xf32>
    %6 = tpu.matmul %2, %1, %cst {dimension_numbers = #tpu.dot_dimension_numbers<[1], [0], [0], [1], [0, 0, 1, 1], [], []>} : vector<8x256xbf16>, vector<256x64xbf16>, vector<8x64xf32> -> vector<8x64xf32>
    %cst_3 = arith.constant dense<0.000000e+00> : vector<8x64xf32>
    %7 = tpu.matmul %5, %1, %cst_3 {dimension_numbers = #tpu.dot_dimension_numbers<[1], [0], [0], [1], [0, 0, 1, 1], [], []>} : vector<8x256xbf16>, vector<256x64xbf16>, vector<8x64xf32> -> vector<8x64xf32>
    %8 = arith.addf %6, %7 : vector<8x64xf32>
    %c0_4 = arith.constant 0 : index
    %c0_5 = arith.constant 0 : index
    %9 = vector.load %arg3[%c0_4, %c0_5] : memref<8x64xf32, #tpu.memory_space<vmem>>, vector<8x64xf32>
    tpu.vector_store %arg3[%c0_4, %c0_5], %8 {strides = array<i32>} : memref<8x64xf32, #tpu.memory_space<vmem>>, vector<8x64xf32>,
    return
  }
  func.func @transform_0(%arg0: i32) -> (i32, i32) {
    %c0_i32 = arith.constant 0 : i32
    %c0_i32_0 = arith.constant 0 : i32
    return %arg0, %c0_i32 : i32, i32
  }
  func.func @transform_1(%arg0: i32) -> (i32, i32) {
    %c0_i32 = arith.constant 0 : i32
    %c0_i32_0 = arith.constant 0 : i32
    %c0_i32_1 = arith.constant 0 : i32
    return %c0_i32, %c0_i32_0 : i32, i32
  }
  func.func @transform_2(%arg0: i32) -> (i32, i32) {
    %c0_i32 = arith.constant 0 : i32
    %c0_i32_0 = arith.constant 0 : i32
    return %arg0, %c0_i32 : i32, i32
  }
}

</mosaic_0001>

<llo_original>
// kernel: tpu_custom_call.1
$region0: #{tpu_custom_call.1}
  #allocation0 [shape = 'u32[]', space=smem, size = 0x4, offset = 0x4, fixed_abs, tag = 'smem constant byte address 0x4 - core index']
  #allocation1 [shape = 'u32[72,128]{1,0:T(1,128)}', space=vmem, size = 0x9000, scoped, tag = 'internal scratch']
  %s0 = inlined_call_operand.vmem [shape: f32[8,256], index: 0, kind: input, shape index: {}]
  %s1 = inlined_call_operand.vmem [shape: bf16[256,64], index: 1, kind: input, shape index: {}]
  %s2 = inlined_call_operand.hbm [shape: f32[8,64], index: 2, kind: output, shape index: {}]
  %s3 = sld [smem:[#allocation0]]
  $region18: #{tpu_custom_call.1} parent=0
    _
  %s5 = ssub.s32 1, %s3
  %s6 = scalar_select 0, %s5, %s3
  $region1: #{tpu_custom_call.1} parent=0
    #allocation2 [shape = 'u8[4096]{0}', space=vmem, size = 0x1000, scoped, tag = 'output window, operand 0, single buffered']
    #allocation3 [shape = 's32[1]{0}', space=sflag, size = 0x4, scoped, tag = 'scoped memory for tpu_custom_call.1']
    %7 = vsyncpa [#allocation3], 0
    // Predicated region
    $region2: #{tpu_custom_call.1} parent=1 // pred_check
      _
    $region3: #{tpu_custom_call.1} parent=1 // pred_check_branch
      %9 = sbr.rel (0) target = $region5
    $region4: #{tpu_custom_call.1} parent=1 // pred_region
      _
    $region5: #{tpu_custom_call.1} parent=1 // pred_fallthru
      _
    // Predicated region
    $region6: #{tpu_custom_call.1} parent=1 // pred_check
      _
    $region7: #{tpu_custom_call.1} parent=1 // pred_check_branch
      %11 = sbr.rel (0) target = $region9
    $region8: #{tpu_custom_call.1} parent=1 // pred_region
      _
    $region9: #{tpu_custom_call.1} parent=1 // pred_fallthru
      _
    %v12 = vld [vmem:[%s0] sm:$0xff]
    %v13 = vld [vmem:[%s0 + $0x8] sm:$0xff]
    %v14 = vld [vmem:[%s1] sm:$0xf]
    %v15 = vld [vmem:[%s1 + $0x4] sm:$0xf]
    %v16 = vld [vmem:[%s1 + $0x8] sm:$0xf]
    %v17 = vld [vmem:[%s1 + $0xc] sm:$0xf]
    %v18 = vld [vmem:[%s1 + $0x10] sm:$0xf]
    %v19 = vld [vmem:[%s1 + $0x14] sm:$0xf]
    %v20 = vld [vmem:[%s1 + $0x18] sm:$0xf]
    %v21 = vld [vmem:[%s1 + $0x1c] sm:$0xf]
    %v22 = vld [vmem:[%s1 + $0x20] sm:$0xf]
    %v23 = vld [vmem:[%s1 + $0x24] sm:$0xf]
    %v24 = vld [vmem:[%s1 + $0x28] sm:$0xf]
    %v25 = vld [vmem:[%s1 + $0x2c] sm:$0xf]
    %v26 = vld [vmem:[%s1 + $0x30] sm:$0xf]
    %v27 = vld [vmem:[%s1 + $0x34] sm:$0xf]
    %v28 = vld [vmem:[%s1 + $0x38] sm:$0xf]
    %v29 = vld [vmem:[%s1 + $0x3c] sm:$0xf]
    %v30 = vld [vmem:[%s1 + $0x40] sm:$0xf]
    %v31 = vld [vmem:[%s1 + $0x44] sm:$0xf]
    %v32 = vld [vmem:[%s1 + $0x48] sm:$0xf]
    %v33 = vld [vmem:[%s1 + $0x4c] sm:$0xf]
    %v34 = vld [vmem:[%s1 + $0x50] sm:$0xf]
    %v35 = vld [vmem:[%s1 + $0x54] sm:$0xf]
    %v36 = vld [vmem:[%s1 + $0x58] sm:$0xf]
    %v37 = vld [vmem:[%s1 + $0x5c] sm:$0xf]
    %v38 = vld [vmem:[%s1 + $0x60] sm:$0xf]
    %v39 = vld [vmem:[%s1 + $0x64] sm:$0xf]
    %v40 = vld [vmem:[%s1 + $0x68] sm:$0xf]
    %v41 = vld [vmem:[%s1 + $0x6c] sm:$0xf]
    %v42 = vld [vmem:[%s1 + $0x70] sm:$0xf]
    %v43 = vld [vmem:[%s1 + $0x74] sm:$0xf]
    %v44 = vld [vmem:[%s1 + $0x78] sm:$0xf]
    %v45 = vld [vmem:[%s1 + $0x7c] sm:$0xf]
    %v46 = vpack.c.bf16 %v13, %v12
    %v47 = vunpack.c.l.bf16 %v46
    %v48 = vunpack.c.h.bf16 %v46
    %v49 = vsub.f32 %v12, %v47
    %v50 = vsub.f32 %v13, %v48
    %v51 = vpack.c.bf16 %v49, %v49
    %v52 = vpack.c.bf16 %v50, %v50
    %v85 = vunpack.c.l.b16 %v14
    %v86 = vunpack.c.l.b16 %v15
    %v87 = vunpack.c.l.b16 %v16
    %v88 = vunpack.c.l.b16 %v17
    %v89 = vunpack.c.l.b16 %v18
    %v90 = vunpack.c.l.b16 %v19
    %v91 = vunpack.c.l.b16 %v20
    %v92 = vunpack.c.l.b16 %v21
    %v93 = vunpack.c.l.b16 %v22
    %v94 = vunpack.c.l.b16 %v23
    %v95 = vunpack.c.l.b16 %v24
    %v96 = vunpack.c.l.b16 %v25
    %v97 = vunpack.c.l.b16 %v26
    %v98 = vunpack.c.l.b16 %v27
    %v99 = vunpack.c.l.b16 %v28
    %v100 = vunpack.c.l.b16 %v29
    %v101 = vunpack.c.l.b16 %v30
    %v102 = vunpack.c.l.b16 %v31
    %v103 = vunpack.c.l.b16 %v32
    %v104 = vunpack.c.l.b16 %v33
    %v105 = vunpack.c.l.b16 %v34
    %v106 = vunpack.c.l.b16 %v35
    %v107 = vunpack.c.l.b16 %v36
    %v108 = vunpack.c.l.b16 %v37
    %v109 = vunpack.c.l.b16 %v38
    %v110 = vunpack.c.l.b16 %v39
    %v111 = vunpack.c.l.b16 %v40
    %v112 = vunpack.c.l.b16 %v41
    %v113 = vunpack.c.l.b16 %v42
    %v114 = vunpack.c.l.b16 %v43
    %v115 = vunpack.c.l.b16 %v44
    %v116 = vunpack.c.l.b16 %v45
    %v117 = vpack.c.b16 %v86, %v85
    %v118 = vpack.c.b16 %v88, %v87
    %v119 = vpack.c.b16 %v90, %v89
    %v120 = vpack.c.b16 %v92, %v91
    %v121 = vpack.c.b16 %v94, %v93
    %v122 = vpack.c.b16 %v96, %v95
    %v123 = vpack.c.b16 %v98, %v97
    %v124 = vpack.c.b16 %v100, %v99
    %v125 = vpack.c.b16 %v102, %v101
    %v126 = vpack.c.b16 %v104, %v103
    %v127 = vpack.c.b16 %v106, %v105
    %v128 = vpack.c.b16 %v108, %v107
    %v129 = vpack.c.b16 %v110, %v109
    %v130 = vpack.c.b16 %v112, %v111
    %v131 = vpack.c.b16 %v114, %v113
    %v132 = vpack.c.b16 %v116, %v115
    %149 = vmatpush.bf16.msra.mxu0 %v124
    %150 = vmatpush.bf16.msra.mxu0 %v123
    %151 = vmatpush.bf16.msra.mxu0 %v122
    %152 = vmatpush.bf16.msra.mxu0 %v121
    %153 = vmatpush.bf16.msra.mxu0 %v120
    %154 = vmatpush.bf16.msra.mxu0 %v119
    %155 = vmatpush.bf16.msra.mxu0 %v118
    %156 = vmatpush.bf16.msra.mxu0 %v117
    %157 = vmatmul.bf16.gmra.mxu0 %v51
    %v158 = vpop.f32.mrf.mxu0
    %v159 = vadd.f32 0.0, %v158
    %v160 = vpop.f32.mrf.mxu0
    %161 = vdwg.mxu0
    %162 = vmatpush.bf16.msra.mxu0 %v132
    %163 = vmatpush.bf16.msra.mxu0 %v131
    %164 = vmatpush.bf16.msra.mxu0 %v130
    %165 = vmatpush.bf16.msra.mxu0 %v129
    %166 = vmatpush.bf16.msra.mxu0 %v128
    %167 = vmatpush.bf16.msra.mxu0 %v127
    %168 = vmatpush.bf16.msra.mxu0 %v126
    %169 = vmatpush.bf16.msra.mxu0 %v125
    %170 = vmatmul.bf16.gmra.mxu0 %v52
    %v171 = vpop.f32.mrf.mxu0
    %v172 = vadd.f32 %v159, %v171
    %v173 = vpop.f32.mrf.mxu0
    %174 = vdwg.mxu0
    %v176 = vunpack.c.l.b16 %v46
    %v177 = vunpack.c.h.b16 %v46
    %v178 = vpack.c.b16 %v176, %v176
    %v179 = vpack.c.b16 %v177, %v177
    %182 = vmatpush.bf16.msra.mxu0 %v124
    %183 = vmatpush.bf16.msra.mxu0 %v123
    %184 = vmatpush.bf16.msra.mxu0 %v122
    %185 = vmatpush.bf16.msra.mxu0 %v121
    %186 = vmatpush.bf16.msra.mxu0 %v120
    %187 = vmatpush.bf16.msra.mxu0 %v119
    %188 = vmatpush.bf16.msra.mxu0 %v118
    %189 = vmatpush.bf16.msra.mxu0 %v117
    %190 = vmatmul.bf16.gmra.mxu0 %v178
    %v191 = vpop.f32.mrf.mxu0
    %v192 = vadd.f32 %v172, %v191
    %v193 = vpop.f32.mrf.mxu0
    %194 = vdwg.mxu0
    %195 = vmatpush.bf16.msra.mxu0 %v132
    %196 = vmatpush.bf16.msra.mxu0 %v131
    %197 = vmatpush.bf16.msra.mxu0 %v130
    %198 = vmatpush.bf16.msra.mxu0 %v129
    %199 = vmatpush.bf16.msra.mxu0 %v128
    %200 = vmatpush.bf16.msra.mxu0 %v127
    %201 = vmatpush.bf16.msra.mxu0 %v126
    %202 = vmatpush.bf16.msra.mxu0 %v125
    %203 = vmatmul.bf16.gmra.mxu0 %v179
    %v204 = vpop.f32.mrf.mxu0
    %v205 = vadd.f32 %v192, %v204
    %v206 = vpop.f32.mrf.mxu0
    %207 = vdwg.mxu0
    %vm208 = vcmask 523264
    %209 = vst.msk [vmem:[#allocation2] sm:$0xff] %vm208, %v205
    // Predicated region
    $region10: #{tpu_custom_call.1} parent=1 // pred_check
      _
    $region11: #{tpu_custom_call.1} parent=1 // pred_check_branch
      %211 = sbr.rel (0) target = $region13
    $region12: #{tpu_custom_call.1} parent=1 // pred_region
      %213 = vsyncadd [#allocation3], 0
      %s215 = sshll.u32 [#allocation2], 4
      %s216 = int_to_ptr.vmem [resolvable:$true] %s215
      %s217 = sshll.u32 %s2, 4
      %s218 = int_to_ptr.hbm [resolvable:$true] %s217
      %220 = dma.vmem_to_hbm [thread:$0]  %s216, 128, %s218, [#allocation3]
    $region13: #{tpu_custom_call.1} parent=1 // pred_fallthru
      _
    // Predicated region
    $region14: #{tpu_custom_call.1} parent=1 // pred_check
      _
    $region15: #{tpu_custom_call.1} parent=1 // pred_check_branch
      %222 = sbr.rel (0) target = $region17
    $region16: #{tpu_custom_call.1} parent=1 // pred_region
      %224 = dma.done [#allocation3], 128
    $region17: #{tpu_custom_call.1} parent=1 // pred_fallthru
      _
    %225 = vsyncpa [#allocation3], 1

</llo_original>
